<compile_context>
chip_gen: v7x
topology: tpu7x:2x2x1
jax: 0.10.0
libtpu: 0.0.40
codegen_flags: <defaults>
</compile_context>

<pallas_src>
import jax
import jax.numpy as jnp
from jax.experimental import pallas as pl
from jax.experimental.pallas import tpu as pltpu


def _round_up(x, m):
    return ((x + m - 1) // m) * m


def _packed_linear_kernel(x_ref, w_ref, b_ref, o_ref):
    # y = x_packed @ W_pack + b_pack ; single MXU contraction, f32 accumulation,
    # lane-dense (256-wide K, 128-wide N) loads/stores.
    y = jnp.dot(x_ref[...], w_ref[...], preferred_element_type=jnp.float32)
    o_ref[...] = (y + b_ref[...]).astype(o_ref.dtype)


class EpsilonRule:
    """JAX/Pallas port of lxt EpsilonRule wrapping an nn.Linear.

    forward(x) returns exactly the wrapped module's forward output. epsilon is
    kept for parity with the PyTorch module; it is only used by the relevance
    backward pass (not implemented here).
    """

    def __init__(self, weight, bias, epsilon=1e-8,
                 block_m=4096, min_pallas_rows=2048, pack=8):
        weight = jnp.asarray(weight)                  # (N_out, K), nn.Linear layout
        bias = jnp.asarray(bias)
        self.N, self.K = weight.shape[0], weight.shape[1]
        self.epsilon = epsilon                        # backward-only; unused in forward
        self.block_m = block_m                        # rows (original M) per grid step
        self.min_pallas_rows = min_pallas_rows        # below this, plain XLA wins
        self.pack = pack                              # lane-packing factor (8 -> K=256, N=128)

        # Fallback path params (un-packed), bias pre-cast to f32 once.
        self.weight_t = weight.T                      # (K, N)
        self.bias_f32 = bias.reshape(1, self.N).astype(jnp.float32)

        # Packed params, built ONCE: block-diagonal weight (pack*K, pack*N) and
        # tiled f32 bias (1, pack*N).  Weight stays in its native dtype so the
        # MXU sees native-dtype operands (works for bf16 too).
        self.weight_pack = jnp.kron(jnp.eye(pack, dtype=weight.dtype), self.weight_t)
        self.bias_pack = jnp.tile(self.bias_f32, (1, pack))

    def __call__(self, x):
        # x: (B, S, K)
        B, S, K = x.shape
        N = self.N
        P = self.pack
        M = B * S
        x2 = x.reshape(M, K)

        # Tiny M (dispatch overhead > work) or M not packable: plain XLA, with
        # f32 accumulation for numerical parity with the kernel path.
        if M < self.min_pallas_rows or (M % P) != 0:
            y = jnp.dot(x2, self.weight_t, preferred_element_type=jnp.float32) + self.bias_f32
            return y.astype(x.dtype).reshape(B, S, N)

        Mp = M // P                                   # packed rows
        Kp, Np = P * K, P * N                         # 256, 128 for Linear(32, 16)
        xp = x2.reshape(Mp, Kp)                       # contiguous -> free reshape

        # Packed-row tile: big (HBM-bound) but split >= 2 even steps so both
        # v7x TensorCores get balanced work.  Multiple of 8 sublanes.
        block_mp = max(8, self.block_m // P)
        tm = min(block_mp, _round_up(pl.cdiv(Mp, 2), 8))
        grid_m = pl.cdiv(Mp, tm)

        itemsize = jnp.dtype(x.dtype).itemsize
        cost = pl.CostEstimate(
            flops=2 * Mp * Kp * Np,                   # actual MXU work (block-diag)
            transcendentals=0,
            bytes_accessed=itemsize * (M * K + M * N + Kp * Np) + 4 * Np,
        )

        out = pl.pallas_call(
            _packed_linear_kernel,
            out_shape=jax.ShapeDtypeStruct((Mp, Np), x.dtype),
            grid=(grid_m,),
            in_specs=[
                pl.BlockSpec((tm, Kp), lambda i: (i, 0)),   # x tile, pipelined over M
                pl.BlockSpec((Kp, Np), lambda i: (0, 0)),   # packed W resident
                pl.BlockSpec((1, Np), lambda i: (0, 0)),    # packed f32 bias resident
            ],
            out_specs=pl.BlockSpec((tm, Np), lambda i: (i, 0)),
            compiler_params=pltpu.CompilerParams(
                dimension_semantics=("parallel",)           # v7x: shard M across both TCs
            ),
            cost_estimate=cost,
        )(xp, self.weight_pack, self.bias_pack)

        return out.reshape(B, S, N)                   # (Mp, Np) -> (M, N) is free


if __name__ == "__main__":
    key = jax.random.PRNGKey(0)
    kx, kw, kb, kx2 = jax.random.split(key, 4)

    # Shapes consistent with nn.Linear(in_features=32, out_features=16).
    K, N = 32, 16
    weight = jax.random.normal(kw, (N, K), dtype=jnp.float32) * (1.0 / jnp.sqrt(K))
    bias = jax.random.normal(kb, (N,), dtype=jnp.float32) * 0.1
    rule = EpsilonRule(weight, bias, epsilon=1e-8)

    # Case 1: Pallas path.  M = 4*520 = 2080 >= threshold, divisible by 8, and
    # NOT a multiple of the chosen tile -> exercises the masked ragged final
    # output block as well as the balanced 2-step grid.
    B, S = 4, 520
    x = jax.random.normal(kx, (B, S, K), dtype=jnp.float32)
    out = jax.block_until_ready(rule(x))
    ref = jnp.einsum("bsk,nk->bsn", x, weight) + bias
    assert out.shape == (B, S, N)
    assert jnp.allclose(out, ref, atol=1e-5, rtol=1e-5), "Pallas path mismatch vs reference"

    # Case 2: tiny M -> XLA fallback path; check numerical parity too.
    xs = jax.random.normal(kx2, (2, 8, K), dtype=jnp.float32)
    outs = jax.block_until_ready(rule(xs))
    refs = jnp.einsum("bsk,nk->bsn", xs, weight) + bias
    assert outs.shape == (2, 8, N)
    assert jnp.allclose(outs, refs, atol=1e-5, rtol=1e-5), "fallback path mismatch vs reference"

    print("KERNEL_OK")
</pallas_src>

<mosaic_0001>
module attributes {stable_mosaic.version = 11 : i64} {
  func.func @_packed_linear_kernel(%arg0: i32, %arg1: memref<136x256xf32, #tpu.memory_space<vmem>>, %arg2: memref<256x128xf32, #tpu.memory_space<vmem>>, %arg3: memref<1x128xf32, #tpu.memory_space<vmem>>, %arg4: memref<136x128xf32, #tpu.memory_space<vmem>>) attributes {dimension_semantics = [#tpu.dimension_semantics<parallel>], iteration_bounds = array<i64: 2>, scalar_prefetch = 0 : i64, scratch_operands = 0 : i64, tpu.core_type = #tpu.core_type<tc>, window_params = [{transform_indices = @transform_0, window_bounds = array<i64: 136, 256>}, {pipeline_mode = #tpu.pipeline_mode<synchronous>, transform_indices = @transform_1, window_bounds = array<i64: 256, 128>}, {pipeline_mode = #tpu.pipeline_mode<synchronous>, transform_indices = @transform_2, window_bounds = array<i64: 1, 128>}, {transform_indices = @transform_3, window_bounds = array<i64: 136, 128>}]} {
    %c0 = arith.constant 0 : index
    %c0_0 = arith.constant 0 : index
    %0 = vector.load %arg1[%c0, %c0_0] : memref<136x256xf32, #tpu.memory_space<vmem>>, vector<136x256xf32>
    %c0_1 = arith.constant 0 : index
    %c0_2 = arith.constant 0 : index
    %1 = vector.load %arg2[%c0_1, %c0_2] : memref<256x128xf32, #tpu.memory_space<vmem>>, vector<256x128xf32>
    %cst = arith.constant dense<0.000000e+00> : vector<136x128xf32>
    %2 = tpu.matmul %0, %1, %cst {dimension_numbers = #tpu.dot_dimension_numbers<[1], [0], [0], [1], [0, 0, 1, 1], [], []>} : vector<136x256xf32>, vector<256x128xf32>, vector<136x128xf32> -> vector<136x128xf32>
    %c0_3 = arith.constant 0 : index
    %c0_4 = arith.constant 0 : index
    %3 = vector.load %arg3[%c0_3, %c0_4] : memref<1x128xf32, #tpu.memory_space<vmem>>, vector<1x128xf32>
    %4 = vector.broadcast %3 : vector<1x128xf32> to vector<136x128xf32>
    %5 = arith.addf %2, %4 : vector<136x128xf32>
    %c0_5 = arith.constant 0 : index
    %c0_6 = arith.constant 0 : index
    %6 = vector.load %arg4[%c0_5, %c0_6] : memref<136x128xf32, #tpu.memory_space<vmem>>, vector<136x128xf32>
    tpu.vector_store %arg4[%c0_5, %c0_6], %5 {strides = array<i32>} : memref<136x128xf32, #tpu.memory_space<vmem>>, vector<136x128xf32>,
    return
  }
  func.func @transform_0(%arg0: i32) -> (i32, i32) {
    %c0_i32 = arith.constant 0 : i32
    %c0_i32_0 = arith.constant 0 : i32
    return %arg0, %c0_i32 : i32, i32
  }
  func.func @transform_1(%arg0: i32) -> (i32, i32) {
    %c0_i32 = arith.constant 0 : i32
    %c0_i32_0 = arith.constant 0 : i32
    %c0_i32_1 = arith.constant 0 : i32
    return %c0_i32, %c0_i32_0 : i32, i32
  }
  func.func @transform_2(%arg0: i32) -> (i32, i32) {
    %c0_i32 = arith.constant 0 : i32
    %c0_i32_0 = arith.constant 0 : i32
    %c0_i32_1 = arith.constant 0 : i32
    return %c0_i32, %c0_i32_0 : i32, i32
  }
  func.func @transform_3(%arg0: i32) -> (i32, i32) {
    %c0_i32 = arith.constant 0 : i32
    %c0_i32_0 = arith.constant 0 : i32
    return %arg0, %c0_i32 : i32, i32
  }
}

</mosaic_0001>

<llo_original>
// kernel: tpu_custom_call.1
$region0: #{tpu_custom_call.1}
  #allocation0 [shape = 'u32[]', space=smem, size = 0x4, offset = 0x4, fixed_abs, tag = 'smem constant byte address 0x4 - core index']
  #allocation1 [shape = 'u32[144,128]{1,0:T(1,128)}', space=vmem, size = 0x12000, scoped, tag = 'internal scratch']
  %s0 = inlined_call_operand.hbm [shape: f32[260,256], index: 0, kind: input, shape index: {}]
  %s1 = inlined_call_operand.hbm [shape: f32[256,128], index: 1, kind: input, shape index: {}]
  %s2 = inlined_call_operand.vmem [shape: f32[1,128], index: 2, kind: input, shape index: {}]
  %s3 = inlined_call_operand.hbm [shape: f32[260,128], index: 3, kind: output, shape index: {}]
  %s4 = sld [smem:[#allocation0]]
  $region53: #{tpu_custom_call.1} parent=0
    _
  %s6 = ssub.s32 1, %s4
  %s7 = scalar_select 0, %s6, %s4
  $region1: #{tpu_custom_call.1} parent=0
    #allocation2 [shape = 'u8[278528]{0}', space=vmem, size = 0x44000, scoped, tag = 'input window, operand 0']
    #allocation3 [shape = 's32[2]{0}', space=sflag, size = 0x8, scoped, tag = 'scoped memory for tpu_custom_call.1']
    #allocation4 [shape = 's32[2]{0}', space=sflag, size = 0x8, scoped, tag = 'scoped memory for tpu_custom_call.1']
    #allocation5 [shape = 'u8[131072]{0}', space=vmem, size = 0x20000, scoped, tag = 'input window, operand 1, single buffered']
    #allocation6 [shape = 's32[1]{0}', space=sflag, size = 0x4, scoped, tag = 'scoped memory for tpu_custom_call.1']
    #allocation7 [shape = 'u8[139264]{0}', space=vmem, size = 0x22000, scoped, tag = 'output window, operand 0']
    %8 = vsyncpa [#allocation3], 0
    %s9 = scalar_lea.sflag [#allocation3], 1
    %10 = vsyncpa %s9, 0
    %11 = vsyncpa [#allocation6], 0
    %12 = vsyncpa [#allocation4], 0
    %s13 = scalar_lea.sflag [#allocation4], 1
    %14 = vsyncpa %s13, 0
    loop: start=0, step=1, limit=4
    $region2: #{tpu_custom_call.1} parent=1 // loop_pre_header
      _
    $region3: #{tpu_custom_call.1} parent=1 // loop_header
      %s16 = sphi 0, %s20
      %p17 = scmp.ge.s32.totalorder %s16, 4
      %s26 = sphi 0, %s28
      %s29 = sphi 0, %s26
      %s30 = sphi 0, %s29
      %s46 = sphi 0, %s30
      %s50 = sphi 0, %s50
      %s52 = sphi 0, %s50
      %s53 = sphi 0, %s52
      %s67 = sphi 0, %s53
      %s71 = sphi 0, %s71
      %s73 = sphi 0, %s71
      %s74 = sphi 0, %s73
      %s88 = sphi 0, %s74
      %s94 = sphi 0, %s96
      %s97 = sphi 0, %s94
      %s98 = sphi 0, %s97
      %s114 = sphi 0, %s98
    $region4: #{tpu_custom_call.1} parent=1 // loop_header_branch
      %19 = sbr.rel (%p17) target = $region8
    $region5: #{tpu_custom_call.1} parent=1 // loop_body
      %s21 = ssub.s32 %s16, 1
      %s22 = ssub.s32 %s16, 2
      %s23 = sadd.s32 %s16, 1
      %s24 = ssub.s32 %s16, %s23
      %p25 = scmp.eq.s32.totalorder %s24, 0
      %s27 = sadd.s32 %s26, 1
      %s28 = scalar_select %p25, %s26, %s27
      %p31 = pneg %p25
      %p32 = scmp.eq.s32.totalorder %s16, 1
      %p33 = por %p31, %p32
      %p34 = scmp.ne.s32.totalorder %s26, %s29
      %p35 = scmp.eq.s32.totalorder %s16, 0
      %p36 = por %p34, %p35
      %p37 = scmp.ne.s32.totalorder %s26, %s29
      %p38 = scmp.eq.s32.totalorder %s21, 1
      %p39 = por %p37, %p38
      %p40 = scmp.ne.s32.totalorder %s29, %s30
      %p41 = scmp.eq.s32.totalorder %s21, 0
      %p42 = por %p40, %p41
      %p43 = scmp.ne.s32.totalorder %s29, %s30
      %p44 = scmp.eq.s32.totalorder %s22, 1
      %p45 = por %p43, %p44
      %p47 = scmp.ne.s32.totalorder %s30, %s46
      %p48 = scmp.eq.s32.totalorder %s22, 0
      %p49 = por %p47, %p48
      %s51 = sadd.s32 %s50, 1
      %p54 = scmp.eq.s32.totalorder %s16, 1
      %p55 = scmp.ne.s32.totalorder %s50, %s52
      %p56 = scmp.eq.s32.totalorder %s16, 0
      %p57 = por %p55, %p56
      %p58 = scmp.ne.s32.totalorder %s50, %s52
      %p59 = scmp.eq.s32.totalorder %s21, 1
      %p60 = por %p58, %p59
      %p61 = scmp.ne.s32.totalorder %s52, %s53
      %p62 = scmp.eq.s32.totalorder %s21, 0
      %p63 = por %p61, %p62
      %p64 = scmp.ne.s32.totalorder %s52, %s53
      %p65 = scmp.eq.s32.totalorder %s22, 1
      %p66 = por %p64, %p65
      %p68 = scmp.ne.s32.totalorder %s53, %s67
      %p69 = scmp.eq.s32.totalorder %s22, 0
      %p70 = por %p68, %p69
      %s72 = sadd.s32 %s71, 1
      %p75 = scmp.eq.s32.totalorder %s16, 1
      %p76 = scmp.ne.s32.totalorder %s71, %s73
      %p77 = scmp.eq.s32.totalorder %s16, 0
      %p78 = por %p76, %p77
      %p79 = scmp.ne.s32.totalorder %s71, %s73
      %p80 = scmp.eq.s32.totalorder %s21, 1
      %p81 = por %p79, %p80
      %p82 = scmp.ne.s32.totalorder %s73, %s74
      %p83 = scmp.eq.s32.totalorder %s21, 0
      %p84 = por %p82, %p83
      %p85 = scmp.ne.s32.totalorder %s73, %s74
      %p86 = scmp.eq.s32.totalorder %s22, 1
      %p87 = por %p85, %p86
      %p89 = scmp.ne.s32.totalorder %s74, %s88
      %p90 = scmp.eq.s32.totalorder %s22, 0
      %p91 = por %p89, %p90
      %s92 = ssub.s32 %s16, %s23
      %p93 = scmp.eq.s32.totalorder %s92, 0
      %s95 = sadd.s32 %s94, 1
      %s96 = scalar_select %p93, %s94, %s95
      %p99 = pneg %p93
      %p100 = scmp.eq.s32.totalorder %s16, 1
      %p101 = por %p99, %p100
      %p102 = scmp.ne.s32.totalorder %s94, %s97
      %p103 = scmp.eq.s32.totalorder %s16, 0
      %p104 = por %p102, %p103
      %p105 = scmp.ne.s32.totalorder %s94, %s97
      %p106 = scmp.eq.s32.totalorder %s21, 1
      %p107 = por %p105, %p106
      %p108 = scmp.ne.s32.totalorder %s97, %s98
      %p109 = scmp.eq.s32.totalorder %s21, 0
      %p110 = por %p108, %p109
      %p111 = scmp.ne.s32.totalorder %s97, %s98
      %p112 = scmp.eq.s32.totalorder %s22, 1
      %p113 = por %p111, %p112
      %p115 = scmp.ne.s32.totalorder %s98, %s114
      %p116 = scmp.eq.s32.totalorder %s22, 0
      %p117 = por %p115, %p116
      %p118 = scmp.le.s32.totalorder 1, %s16
      %p119 = scmp.lt.s32.totalorder %s16, 3
      %p120 = pnand %p118, %p119
      %p121 = pneg %p120
      // Predicated region
      $region9: #{tpu_custom_call.1} parent=5 // pred_check
        _
      $region10: #{tpu_custom_call.1} parent=5 // pred_check_branch
        %123 = sbr.rel (%p120) target = $region12
      $region11: #{tpu_custom_call.1} parent=5 // pred_region
        %s124 = ssub.s32 %s16, 1
        // Predicated region
        $region13: #{tpu_custom_call.1} parent=11 // pred_check
          %p125 = pneg %p63
        $region14: #{tpu_custom_call.1} parent=11 // pred_check_branch
          %127 = sbr.rel (%p125) target = $region16
        $region15: #{tpu_custom_call.1} parent=11 // pred_region
          %s129 = ssub.s32 4096, 4096
          %130 = vsyncadd [#allocation6], %s129
          %s131 = sshll.u32 [#allocation5], 4
          %s132 = int_to_ptr.vmem [resolvable:$true] %s131
          %137 = dma.hbm_to_vmem [thread:$0]  %s1, 4096, %s132, [#allocation6], 128, 128, 8
        $region16: #{tpu_custom_call.1} parent=11 // pred_fallthru
          _
        // Predicated region
        $region17: #{tpu_custom_call.1} parent=11 // pred_check
          %p138 = pneg %p84
        $region18: #{tpu_custom_call.1} parent=11 // pred_check_branch
          %140 = sbr.rel (%p138) target = $region20
        $region19: #{tpu_custom_call.1} parent=11 // pred_region
          _
        $region20: #{tpu_custom_call.1} parent=11 // pred_fallthru
          _
      $region12: #{tpu_custom_call.1} parent=5 // pred_fallthru
        _
      %p141 = scmp.lt.s32.totalorder %s16, 2
      // Predicated region
      $region21: #{tpu_custom_call.1} parent=5 // pred_check
        %p142 = pneg %p141
      $region22: #{tpu_custom_call.1} parent=5 // pred_check_branch
        %144 = sbr.rel (%p142) target = $region24
      $region23: #{tpu_custom_call.1} parent=5 // pred_region
        // Predicated region
        $region25: #{tpu_custom_call.1} parent=23 // pred_check
          %p145 = pneg %p36
        $region26: #{tpu_custom_call.1} parent=23 // pred_check_branch
          %147 = sbr.rel (%p145) target = $region28
        $region27: #{tpu_custom_call.1} parent=23 // pred_region
          %s148 = sand.u32 %s26, 1
          %s149 = scalar_lea.sflag [#allocation3], %s148
          %s150 = sand.u32 %s26, 1
          %s151 = smul.addr %s150, 272
          %s152 = scalar_lea.vmem [#allocation2], %s151
          %s153 = smul.u32 17, %s16
          %s154 = ssub.s32 33, %s153
          %p155 = scmp.lt.s32.totalorder %s154, 17
          %s156 = scalar_select %p155, %s154, 17
          %s157 = smul.u32 128, %s156
          %s158 = smul.u32 %s157, 2
          %s160 = ssub.s32 4352, %s158
          %161 = vsyncadd %s149, %s160
          %p162 = scmp.ne.s32.totalorder 0, %s158
          %s163 = smul.addr %s153, 2
          %s164 = smul.addr %s163, 128
          %s165 = scalar_lea.hbm %s0, %s164
          %s166 = smul.u32 16, %s156
          %s167 = sshll.u32 %s152, 4
          %s168 = int_to_ptr.vmem [resolvable:$true] %s167
          %s169 = sshll.u32 %s166, 4
          %173 = dma.hbm_to_vmem [thread:$0]  (%p162), %s165, %s169, %s168, %s149, 256, 256, 16
        $region28: #{tpu_custom_call.1} parent=23 // pred_fallthru
          _
      $region24: #{tpu_custom_call.1} parent=5 // pred_fallthru
        _
      %p174 = scmp.le.s32.totalorder 1, %s16
      %p175 = scmp.lt.s32.totalorder %s16, 3
      %p176 = pnand %p174, %p175
      %p177 = pneg %p176
      // Predicated region
      $region29: #{tpu_custom_call.1} parent=5 // pred_check
        _
      $region30: #{tpu_custom_call.1} parent=5 // pred_check_branch
        %179 = sbr.rel (%p176) target = $region32
      $region31: #{tpu_custom_call.1} parent=5 // pred_region
        %s180 = ssub.s32 %s16, 1
        %s181 = sand.u32 %s29, 1
        %s182 = scalar_lea.sflag [#allocation3], %s181
        %s183 = sand.u32 %s29, 1
        %s184 = smul.addr %s183, 272
        %s185 = scalar_lea.vmem [#allocation2], %s184
        // Predicated region
        $region33: #{tpu_custom_call.1} parent=31 // pred_check
          %p186 = pneg %p42
        $region34: #{tpu_custom_call.1} parent=31 // pred_check_branch
          %188 = sbr.rel (%p186) target = $region36
        $region35: #{tpu_custom_call.1} parent=31 // pred_region
          %189 = dma.done %s182, 4352
        $region36: #{tpu_custom_call.1} parent=31 // pred_fallthru
          _
        // Predicated region
        $region37: #{tpu_custom_call.1} parent=31 // pred_check
          %p190 = pneg %p63
        $region38: #{tpu_custom_call.1} parent=31 // pred_check_branch
          %192 = sbr.rel (%p190) target = $region40
        $region39: #{tpu_custom_call.1} parent=31 // pred_region
          %193 = dma.done [#allocation6], 4096
        $region40: #{tpu_custom_call.1} parent=31 // pred_fallthru
          _
        %s194 = sand.u32 %s29, 1
        %s195 = scalar_lea.sflag [#allocation3], %s194
        %s196 = sand.u32 %s29, 1
        %s197 = smul.addr %s196, 272
        %s198 = scalar_lea.vmem [#allocation2], %s197
        %p199 = pneg %p42
        %p200 = pneg %p39
        %p201 = pneg %p63
        %p202 = pneg %p60
        %p203 = pneg %p84
        %p204 = pneg %p81
        %p205 = pneg %p110
        %p206 = pneg %p107
        %s207 = sand.u32 %s97, 1
        %s208 = scalar_lea.sflag [#allocation4], %s207
        %s209 = sand.u32 %s97, 1
        %s210 = smul.addr %s209, 136
        %s211 = scalar_lea.vmem [#allocation7], %s210
        %s212 = smul.u32 17, %s21
        %s213 = ssub.s32 33, %s212
        %p214 = scmp.lt.s32.totalorder %s213, 17
        %s215 = scalar_select %p214, %s213, 17
        %s216 = smul.u32 128, %s215
        %s217 = smul.u32 %s216, 2
        %s218 = smul.u32 17, %s21
        %s219 = ssub.s32 33, %s218
        %p220 = scmp.lt.s32.totalorder %s219, 17
        %s221 = scalar_select %p220, %s219, 17
        %s222 = smul.u32 128, %s221
        %v223 = vld [vmem:[%s185] sm:$0xff]
        %v224 = vld [vmem:[%s185 + $0x8] sm:$0xff]
        %v225 = vld [vmem:[%s185 + $0x10] sm:$0xff]
        %v226 = vld [vmem:[%s185 + $0x18] sm:$0xff]
        %v227 = vld [vmem:[%s185 + $0x20] sm:$0xff]
        %v228 = vld [vmem:[%s185 + $0x28] sm:$0xff]
        %v229 = vld [vmem:[%s185 + $0x30] sm:$0xff]
        %v230 = vld [vmem:[%s185 + $0x38] sm:$0xff]
        %v231 = vld [vmem:[%s185 + $0x40] sm:$0xff]
        %v232 = vld [vmem:[%s185 + $0x48] sm:$0xff]
        %v233 = vld [vmem:[%s185 + $0x50] sm:$0xff]
        %v234 = vld [vmem:[%s185 + $0x58] sm:$0xff]
        %v235 = vld [vmem:[%s185 + $0x60] sm:$0xff]
        %v236 = vld [vmem:[%s185 + $0x68] sm:$0xff]
        %v237 = vld [vmem:[%s185 + $0x70] sm:$0xff]
        %v238 = vld [vmem:[%s185 + $0x78] sm:$0xff]
        %v239 = vld [vmem:[%s185 + $0x80] sm:$0xff]
        %v240 = vld [vmem:[%s185 + $0x88] sm:$0xff]
        %v241 = vld [vmem:[%s185 + $0x90] sm:$0xff]
        %v242 = vld [vmem:[%s185 + $0x98] sm:$0xff]
        %v243 = vld [vmem:[%s185 + $0xa0] sm:$0xff]
        %v244 = vld [vmem:[%s185 + $0xa8] sm:$0xff]
        %v245 = vld [vmem:[%s185 + $0xb0] sm:$0xff]
        %v246 = vld [vmem:[%s185 + $0xb8] sm:$0xff]
        %v247 = vld [vmem:[%s185 + $0xc0] sm:$0xff]
        %v248 = vld [vmem:[%s185 + $0xc8] sm:$0xff]
        %v249 = vld [vmem:[%s185 + $0xd0] sm:$0xff]
        %v250 = vld [vmem:[%s185 + $0xd8] sm:$0xff]
        %v251 = vld [vmem:[%s185 + $0xe0] sm:$0xff]
        %v252 = vld [vmem:[%s185 + $0xe8] sm:$0xff]
        %v253 = vld [vmem:[%s185 + $0xf0] sm:$0xff]
        %v254 = vld [vmem:[%s185 + $0xf8] sm:$0xff]
        %v255 = vld [vmem:[%s185 + $0x100] sm:$0xff]
        %v256 = vld [vmem:[%s185 + $0x108] sm:$0xff]
        %v257 = vld [vmem:[#allocation5] sm:$0xff]
        %v258 = vld [vmem:[#allocation5 + $0x8] sm:$0xff]
        %v259 = vld [vmem:[#allocation5 + $0x10] sm:$0xff]
        %v260 = vld [vmem:[#allocation5 + $0x18] sm:$0xff]
        %v261 = vld [vmem:[#allocation5 + $0x20] sm:$0xff]
        %v262 = vld [vmem:[#allocation5 + $0x28] sm:$0xff]
        %v263 = vld [vmem:[#allocation5 + $0x30] sm:$0xff]
        %v264 = vld [vmem:[#allocation5 + $0x38] sm:$0xff]
        %v265 = vld [vmem:[#allocation5 + $0x40] sm:$0xff]
        %v266 = vld [vmem:[#allocation5 + $0x48] sm:$0xff]
        %v267 = vld [vmem:[#allocation5 + $0x50] sm:$0xff]
        %v268 = vld [vmem:[#allocation5 + $0x58] sm:$0xff]
        %v269 = vld [vmem:[#allocation5 + $0x60] sm:$0xff]
        %v270 = vld [vmem:[#allocation5 + $0x68] sm:$0xff]
        %v271 = vld [vmem:[#allocation5 + $0x70] sm:$0xff]
        %v272 = vld [vmem:[#allocation5 + $0x78] sm:$0xff]
        %v273 = vld [vmem:[#allocation5 + $0x80] sm:$0xff]
        %v274 = vld [vmem:[#allocation5 + $0x88] sm:$0xff]
        %v275 = vld [vmem:[#allocation5 + $0x90] sm:$0xff]
        %v276 = vld [vmem:[#allocation5 + $0x98] sm:$0xff]
        %v277 = vld [vmem:[#allocation5 + $0xa0] sm:$0xff]
        %v278 = vld [vmem:[#allocation5 + $0xa8] sm:$0xff]
        %v279 = vld [vmem:[#allocation5 + $0xb0] sm:$0xff]
        %v280 = vld [vmem:[#allocation5 + $0xb8] sm:$0xff]
        %v281 = vld [vmem:[#allocation5 + $0xc0] sm:$0xff]
        %v282 = vld [vmem:[#allocation5 + $0xc8] sm:$0xff]
        %v283 = vld [vmem:[#allocation5 + $0xd0] sm:$0xff]
        %v284 = vld [vmem:[#allocation5 + $0xd8] sm:$0xff]
        %v285 = vld [vmem:[#allocation5 + $0xe0] sm:$0xff]
        %v286 = vld [vmem:[#allocation5 + $0xe8] sm:$0xff]
        %v287 = vld [vmem:[#allocation5 + $0xf0] sm:$0xff]
        %v288 = vld [vmem:[#allocation5 + $0xf8] sm:$0xff]
        %v289 = vld [vmem:[%s2] sm:$0x1]
        %v291 = vlaneseq
        %v292 = vshrl.u32 %v291, 7
        %v293 = vsub.s32 0, %v292
        %v294 = vrot.slane %v289, %v293
        %296 = vmatprep.subr.mxu0 0.0
        %297 = vmatpush1.msra.mxu0 %v257
        %298 = vmatprep.subr.mxu0 0.0
        %299 = vmatpush1.msra.mxu0 %v258
        %300 = vmatprep.subr.mxu0 0.0
        %301 = vmatpush1.msra.mxu0 %v259
        %302 = vmatprep.subr.mxu0 0.0
        %303 = vmatpush1.msra.mxu0 %v260
        %304 = vmatprep.subr.mxu0 0.0
        %305 = vmatpush1.msra.mxu0 %v261
        %306 = vmatprep.subr.mxu0 0.0
        %307 = vmatpush1.msra.mxu0 %v262
        %308 = vmatprep.subr.mxu0 0.0
        %309 = vmatpush1.msra.mxu0 %v263
        %310 = vmatprep.subr.mxu0 0.0
        %311 = vmatpush1.msra.mxu0 %v264
        %312 = vmatprep.subr.mxu0 0.0
        %313 = vmatpush1.msra.mxu0 %v265
        %314 = vmatprep.subr.mxu0 0.0
        %315 = vmatpush1.msra.mxu0 %v266
        %316 = vmatprep.subr.mxu0 0.0
        %317 = vmatpush1.msra.mxu0 %v267
        %318 = vmatprep.subr.mxu0 0.0
        %319 = vmatpush1.msra.mxu0 %v268
        %320 = vmatprep.subr.mxu0 0.0
        %321 = vmatpush1.msra.mxu0 %v269
        %322 = vmatprep.subr.mxu0 0.0
        %323 = vmatpush1.msra.mxu0 %v270
        %324 = vmatprep.subr.mxu0 0.0
        %325 = vmatpush1.msra.mxu0 %v271
        %326 = vmatprep.subr.mxu0 0.0
        %327 = vmatpush1.msra.mxu0 %v272
        %328 = vmatprep.subr.mxu0 0.0
        %329 = vmatpush1.msra.mxu0 %v273
        %330 = vmatprep.subr.mxu0 0.0
        %331 = vmatpush1.msra.mxu0 %v274
        %332 = vmatprep.subr.mxu0 0.0
        %333 = vmatpush1.msra.mxu0 %v275
        %334 = vmatprep.subr.mxu0 0.0
        %335 = vmatpush1.msra.mxu0 %v276
        %336 = vmatprep.subr.mxu0 0.0
        %337 = vmatpush1.msra.mxu0 %v277
        %338 = vmatprep.subr.mxu0 0.0
        %339 = vmatpush1.msra.mxu0 %v278
        %340 = vmatprep.subr.mxu0 0.0
        %341 = vmatpush1.msra.mxu0 %v279
        %342 = vmatprep.subr.mxu0 0.0
        %343 = vmatpush1.msra.mxu0 %v280
        %344 = vmatprep.subr.mxu0 0.0
        %345 = vmatpush1.msra.mxu0 %v281
        %346 = vmatprep.subr.mxu0 0.0
        %347 = vmatpush1.msra.mxu0 %v282
        %348 = vmatprep.subr.mxu0 0.0
        %349 = vmatpush1.msra.mxu0 %v283
        %350 = vmatprep.subr.mxu0 0.0
        %351 = vmatpush1.msra.mxu0 %v284
        %352 = vmatprep.subr.mxu0 0.0
        %353 = vmatpush1.msra.mxu0 %v285
        %354 = vmatprep.subr.mxu0 0.0
        %355 = vmatpush1.msra.mxu0 %v286
        %356 = vmatprep.subr.mxu0 0.0
        %357 = vmatpush1.msra.mxu0 %v287
        %358 = vmatprep.subr.mxu0 0.0
        %359 = vmatpush1.msra.mxu0 %v288
        %360 = vmatprep.mubr.f32.mxu0 %v224
        %361 = vmatmul.mubr.f32.gmra.mrb[0].mxu0 %v223
        %v362 = vpop.f32.mrb[0].mxu0
        %v363 = vadd.f32 %v294, %v362
        %v364 = vpop.f32.mrb[0].mxu0
        %365 = vmatprep.mubr.f32.mxu0 %v226
        %366 = vmatmul.mubr.f32.gmra.mrb[0].mxu0 %v225
        %v367 = vpop.f32.mrb[0].mxu0
        %v368 = vadd.f32 %v294, %v367
        %v369 = vpop.f32.mrb[0].mxu0
        %370 = vmatprep.mubr.f32.mxu0 %v228
        %371 = vmatmul.mubr.f32.gmra.mrb[0].mxu0 %v227
        %v372 = vpop.f32.mrb[0].mxu0
        %v373 = vadd.f32 %v294, %v372
        %v374 = vpop.f32.mrb[0].mxu0
        %375 = vmatprep.mubr.f32.mxu0 %v230
        %376 = vmatmul.mubr.f32.gmra.mrb[0].mxu0 %v229
        %v377 = vpop.f32.mrb[0].mxu0
        %v378 = vadd.f32 %v294, %v377
        %v379 = vpop.f32.mrb[0].mxu0
        %380 = vmatprep.mubr.f32.mxu0 %v232
        %381 = vmatmul.mubr.f32.gmra.mrb[0].mxu0 %v231
        %v382 = vpop.f32.mrb[0].mxu0
        %v383 = vadd.f32 %v294, %v382
        %v384 = vpop.f32.mrb[0].mxu0
        %385 = vmatprep.mubr.f32.mxu0 %v234
        %386 = vmatmul.mubr.f32.gmra.mrb[0].mxu0 %v233
        %v387 = vpop.f32.mrb[0].mxu0
        %v388 = vadd.f32 %v294, %v387
        %v389 = vpop.f32.mrb[0].mxu0
        %390 = vmatprep.mubr.f32.mxu0 %v236
        %391 = vmatmul.mubr.f32.gmra.mrb[0].mxu0 %v235
        %v392 = vpop.f32.mrb[0].mxu0
        %v393 = vadd.f32 %v294, %v392
        %v394 = vpop.f32.mrb[0].mxu0
        %395 = vmatprep.mubr.f32.mxu0 %v238
        %396 = vmatmul.mubr.f32.gmra.mrb[0].mxu0 %v237
        %v397 = vpop.f32.mrb[0].mxu0
        %v398 = vadd.f32 %v294, %v397
        %v399 = vpop.f32.mrb[0].mxu0
        %400 = vmatprep.mubr.f32.mxu0 %v240
        %401 = vmatmul.mubr.f32.gmra.mrb[0].mxu0 %v239
        %v402 = vpop.f32.mrb[0].mxu0
        %v403 = vadd.f32 %v294, %v402
        %v404 = vpop.f32.mrb[0].mxu0
        %405 = vmatprep.mubr.f32.mxu0 %v242
        %406 = vmatmul.mubr.f32.gmra.mrb[0].mxu0 %v241
        %v407 = vpop.f32.mrb[0].mxu0
        %v408 = vadd.f32 %v294, %v407
        %v409 = vpop.f32.mrb[0].mxu0
        %410 = vmatprep.mubr.f32.mxu0 %v244
        %411 = vmatmul.mubr.f32.gmra.mrb[0].mxu0 %v243
        %v412 = vpop.f32.mrb[0].mxu0
        %v413 = vadd.f32 %v294, %v412
        %v414 = vpop.f32.mrb[0].mxu0
        %415 = vmatprep.mubr.f32.mxu0 %v246
        %416 = vmatmul.mubr.f32.gmra.mrb[0].mxu0 %v245
        %v417 = vpop.f32.mrb[0].mxu0
        %v418 = vadd.f32 %v294, %v417
        %v419 = vpop.f32.mrb[0].mxu0
        %420 = vmatprep.mubr.f32.mxu0 %v248
        %421 = vmatmul.mubr.f32.gmra.mrb[0].mxu0 %v247
        %v422 = vpop.f32.mrb[0].mxu0
        %v423 = vadd.f32 %v294, %v422
        %v424 = vpop.f32.mrb[0].mxu0
        %425 = vmatprep.mubr.f32.mxu0 %v250
        %426 = vmatmul.mubr.f32.gmra.mrb[0].mxu0 %v249
        %v427 = vpop.f32.mrb[0].mxu0
        %v428 = vadd.f32 %v294, %v427
        %v429 = vpop.f32.mrb[0].mxu0
        %430 = vmatprep.mubr.f32.mxu0 %v252
        %431 = vmatmul.mubr.f32.gmra.mrb[0].mxu0 %v251
        %v432 = vpop.f32.mrb[0].mxu0
        %v433 = vadd.f32 %v294, %v432
        %v434 = vpop.f32.mrb[0].mxu0
        %435 = vmatprep.mubr.f32.mxu0 %v254
        %436 = vmatmul.mubr.f32.gmra.mrb[0].mxu0 %v253
        %v437 = vpop.f32.mrb[0].mxu0
        %v438 = vadd.f32 %v294, %v437
        %v439 = vpop.f32.mrb[0].mxu0
        %440 = vmatprep.mubr.f32.mxu0 %v256
        %441 = vmatmul.mubr.f32.gmra.mrb[0].mxu0 %v255
        %v442 = vpop.f32.mrb[0].mxu0
        %v443 = vadd.f32 %v294, %v442
        %v444 = vpop.f32.mrb[0].mxu0
        %445 = vdwg.mxu0
        %446 = vst [vmem:[%s211] sm:$0xff] %v363
        %447 = vst [vmem:[%s211 + $0x8] sm:$0xff] %v368
        %448 = vst [vmem:[%s211 + $0x10] sm:$0xff] %v373
        %449 = vst [vmem:[%s211 + $0x18] sm:$0xff] %v378
        %450 = vst [vmem:[%s211 + $0x20] sm:$0xff] %v383
        %451 = vst [vmem:[%s211 + $0x28] sm:$0xff] %v388
        %452 = vst [vmem:[%s211 + $0x30] sm:$0xff] %v393
        %453 = vst [vmem:[%s211 + $0x38] sm:$0xff] %v398
        %454 = vst [vmem:[%s211 + $0x40] sm:$0xff] %v403
        %455 = vst [vmem:[%s211 + $0x48] sm:$0xff] %v408
        %456 = vst [vmem:[%s211 + $0x50] sm:$0xff] %v413
        %457 = vst [vmem:[%s211 + $0x58] sm:$0xff] %v418
        %458 = vst [vmem:[%s211 + $0x60] sm:$0xff] %v423
        %459 = vst [vmem:[%s211 + $0x68] sm:$0xff] %v428
        %460 = vst [vmem:[%s211 + $0x70] sm:$0xff] %v433
        %461 = vst [vmem:[%s211 + $0x78] sm:$0xff] %v438
        %462 = vst [vmem:[%s211 + $0x80] sm:$0xff] %v443
        %s463 = sand.u32 %s97, 1
        %s464 = scalar_lea.sflag [#allocation4], %s463
        %s465 = sand.u32 %s97, 1
        %s466 = smul.addr %s465, 136
        %s467 = scalar_lea.vmem [#allocation7], %s466
        // Predicated region
        $region41: #{tpu_custom_call.1} parent=31 // pred_check
          %p468 = pneg %p107
        $region42: #{tpu_custom_call.1} parent=31 // pred_check_branch
          %470 = sbr.rel (%p468) target = $region44
        $region43: #{tpu_custom_call.1} parent=31 // pred_region
          %s471 = smul.u32 17, %s21
          %s472 = ssub.s32 33, %s471
          %p473 = scmp.lt.s32.totalorder %s472, 17
          %s474 = scalar_select %p473, %s472, 17
          %s475 = smul.u32 128, %s474
          %s477 = ssub.s32 2176, %s475
          %478 = vsyncadd %s464, %s477
          %p479 = scmp.ne.s32.totalorder 0, %s475
          %s480 = smul.addr %s471, 128
          %s481 = scalar_lea.hbm %s3, %s480
          %s482 = smul.u32 8, %s474
          %s483 = sshll.u32 %s467, 4
          %s484 = int_to_ptr.vmem [resolvable:$true] %s483
          %s485 = sshll.u32 %s482, 4
          %489 = dma.vmem_to_hbm [thread:$0]  (%p479), %s484, %s485, %s481, %s464, 128, 128, 8
        $region44: #{tpu_custom_call.1} parent=31 // pred_fallthru
          _
      $region32: #{tpu_custom_call.1} parent=5 // pred_fallthru
        _
      %p490 = scmp.le.s32.totalorder 2, %s16
      // Predicated region
      $region45: #{tpu_custom_call.1} parent=5 // pred_check
        %p491 = pneg %p490
      $region46: #{tpu_custom_call.1} parent=5 // pred_check_branch
        %493 = sbr.rel (%p491) target = $region48
      $region47: #{tpu_custom_call.1} parent=5 // pred_region
        %s494 = ssub.s32 %s16, 2
        // Predicated region
        $region49: #{tpu_custom_call.1} parent=47 // pred_check
          %p495 = pneg %p113
        $region50: #{tpu_custom_call.1} parent=47 // pred_check_branch
          %497 = sbr.rel (%p495) target = $region52
        $region51: #{tpu_custom_call.1} parent=47 // pred_region
          %s498 = sand.u32 %s98, 1
          %s499 = scalar_lea.sflag [#allocation4], %s498
          %s500 = sand.u32 %s98, 1
          %s501 = smul.addr %s500, 136
          %s502 = scalar_lea.vmem [#allocation7], %s501
          %503 = dma.done %s499, 2176
        $region52: #{tpu_custom_call.1} parent=47 // pred_fallthru
          _
      $region48: #{tpu_custom_call.1} parent=5 // pred_fallthru
        _
    $region6: #{tpu_custom_call.1} parent=1 // loop_footer
      %s20 = sadd.s32 1, %s16
    $region7: #{tpu_custom_call.1} parent=1 // loop_footer_branch
      %15 = sbr.rel target = $region3
    $region8: #{tpu_custom_call.1} parent=1 // loop_exit
      _
    %504 = vsyncpa [#allocation3], 1
    %s505 = scalar_lea.sflag [#allocation3], 1
    %506 = vsyncpa %s505, 1
    %507 = vsyncpa [#allocation6], 1
    %508 = vsyncpa [#allocation4], 1
    %s509 = scalar_lea.sflag [#allocation4], 1
    %510 = vsyncpa %s509, 1

</llo_original>
